<compile_context>
chip_gen: v7x
topology: tpu7x:2x2x1
jax: 0.10.0
libtpu: 0.0.40
codegen_flags: <defaults>
</compile_context>

<pallas_src>
import jax
import jax.numpy as jnp
from jax.experimental import pallas as pl
from jax.experimental.pallas import tpu as pltpu


# Bytes allowed for the double-buffered (input + output) batch tiles.
_VMEM_TILE_BUDGET = 12 * 1024 * 1024


def _round_up(n, m):
    return ((n + m - 1) // m) * m


def brdf_embed_kernel(x_ref, w_ref, b_ref, o_ref):
    # x_ref: (bm, d_in_f), w_ref: (d_in_f, d_out_f), b_ref: (1, d_out_f),
    # o_ref: (bm, d_out_f)
    y = jnp.dot(x_ref[...], w_ref[...], preferred_element_type=jnp.float32)
    y = y + b_ref[...]
    # LeakyReLU(0.1): max(y, 0.1*y) == y if y >= 0 else 0.1*y
    o_ref[...] = jnp.maximum(y, 0.1 * y).astype(o_ref.dtype)


@jax.jit
def brdf_embed_block(x, w_t, bias):
    """Pallas implementation of BRDF_EmbedBlock.forward.

    x:    (B, brdf_input_size)                 float32
    w_t:  (brdf_input_size, brdf_embed_size)   Linear weight, pre-transposed
    bias: (brdf_embed_size,) or (1, brdf_embed_size)
    returns (B, brdf_embed_size) float32
    """
    B, d_in = x.shape
    d_out = w_t.shape[1]
    bias = jnp.reshape(bias, (1, d_out))

    # --- lane-dense batch fold -------------------------------------------
    # Fold `fold` consecutive batch rows into the lane dimension so the last
    # dim of both input (fold*d_in) and output (fold*d_out) is lane-dense.
    fold = 128 // d_in if (d_in < 128 and 128 % d_in == 0) else 1
    d_in_f, d_out_f = fold * d_in, fold * d_out

    # Pad only the < fold-row remainder (<= 7 rows); no full-tile padding.
    B_pad = _round_up(B, fold)
    x_p = jnp.pad(x, ((0, B_pad - B), (0, 0))) if B_pad != B else x
    B_f = B_pad // fold
    x_f = x_p.reshape(B_f, d_in_f)

    if fold > 1:
        # Block-diagonal weight: x_f @ kron(I_fold, W_t) == per-row x @ W_t.
        # TODO(synk): in a full model, precompute w_f / b_f once at init time.
        w_f = jnp.kron(jnp.eye(fold, dtype=w_t.dtype), w_t)
        b_f = jnp.tile(bias, (1, fold))
    else:
        w_f, b_f = w_t, bias

    # --- batch tile from a VMEM byte budget -------------------------------
    itemsize = jnp.dtype(x.dtype).itemsize
    bytes_per_row = 2 * (d_in_f + d_out_f) * itemsize  # 2 pipeline buffers
    bm = max(8, (_VMEM_TILE_BUDGET // bytes_per_row) // 8 * 8)
    bm = min(bm, B_f)
    if B_f >= 16:
        # Guarantee >= 2 grid steps so both v7x TensorCores get a share.
        bm = min(bm, _round_up(pl.cdiv(B_f, 2), 8))
    grid_m = pl.cdiv(B_f, bm)

    out_f = pl.pallas_call(
        brdf_embed_kernel,
        out_shape=jax.ShapeDtypeStruct((B_f, d_out_f), x.dtype),
        grid=(grid_m,),
        in_specs=[
            # streamed operand: one batch tile per grid step
            pl.BlockSpec((bm, d_in_f), lambda i: (i, 0)),
            # weight / bias: constant block index -> stays resident in VMEM
            pl.BlockSpec((d_in_f, d_out_f), lambda i: (0, 0)),
            pl.BlockSpec((1, d_out_f), lambda i: (0, 0)),
        ],
        out_specs=pl.BlockSpec((bm, d_out_f), lambda i: (i, 0)),
        compiler_params=pltpu.CompilerParams(
            dimension_semantics=("parallel",),
            vmem_limit_bytes=32 * 1024 * 1024,
        ),
    )(x_f, w_f, b_f)

    out = out_f.reshape(B_pad, d_out)
    return out[:B] if B_pad != B else out


def init_params(key, brdf_input_size, brdf_embed_size):
    """Deterministic init (kaiming-normal-ish scale; params are inputs anyway)."""
    k_w, k_b = jax.random.split(key)
    std = (2.0 / brdf_input_size) ** 0.5
    # PyTorch Linear weight is (out, in); we store the transpose (in, out).
    w = std * jax.random.normal(k_w, (brdf_embed_size, brdf_input_size), jnp.float32)
    w_t = jnp.transpose(w)
    bound = 1.0 / (brdf_input_size ** 0.5)
    bias = jax.random.uniform(
        k_b, (1, brdf_embed_size), jnp.float32, minval=-bound, maxval=bound
    )
    return w_t, bias


def _reference(x, w_t, bias):
    y = x @ w_t + bias
    return jnp.where(y >= 0.0, y, 0.1 * y)


if __name__ == "__main__":
    brdf_input_size = 16
    brdf_embed_size = 32

    key = jax.random.PRNGKey(0)
    k_x, k_p = jax.random.split(key)
    w_t, bias = init_params(k_p, brdf_input_size, brdf_embed_size)

    # batch=100: fold remainder pad (4 rows) + slice path
    # batch=8:   tiny batch, single 1-row folded block
    # batch=200: two grid steps with a partial (masked) last block
    for batch in (100, 8, 200):
        kx = jax.random.fold_in(k_x, batch)
        x = jax.random.normal(kx, (batch, brdf_input_size), jnp.float32)
        out = jax.block_until_ready(brdf_embed_block(x, w_t, bias))
        ref = _reference(x, w_t, bias)
        assert out.shape == (batch, brdf_embed_size)
        assert jnp.allclose(out, ref, atol=1e-5, rtol=1e-5), f"mismatch at B={batch}"

    print("KERNEL_OK")
</pallas_src>

<mosaic_0001>
module attributes {stable_mosaic.version = 11 : i64} {
  func.func @brdf_embed_kernel(%arg0: i32, %arg1: memref<13x128xf32, #tpu.memory_space<vmem>>, %arg2: memref<128x256xf32, #tpu.memory_space<vmem>>, %arg3: memref<1x256xf32, #tpu.memory_space<vmem>>, %arg4: memref<13x256xf32, #tpu.memory_space<vmem>>) attributes {dimension_semantics = [#tpu.dimension_semantics<parallel>], iteration_bounds = array<i64: 1>, scalar_prefetch = 0 : i64, scratch_operands = 0 : i64, tpu.core_type = #tpu.core_type<tc>, window_params = [{transform_indices = @transform_0, window_bounds = array<i64: 13, 128>}, {pipeline_mode = #tpu.pipeline_mode<synchronous>, transform_indices = @transform_1, window_bounds = array<i64: 128, 256>}, {pipeline_mode = #tpu.pipeline_mode<synchronous>, transform_indices = @transform_2, window_bounds = array<i64: 1, 256>}, {transform_indices = @transform_3, window_bounds = array<i64: 13, 256>}]} {
    %c0 = arith.constant 0 : index
    %c0_0 = arith.constant 0 : index
    %0 = vector.load %arg1[%c0, %c0_0] : memref<13x128xf32, #tpu.memory_space<vmem>>, vector<13x128xf32>
    %c0_1 = arith.constant 0 : index
    %c0_2 = arith.constant 0 : index
    %1 = vector.load %arg2[%c0_1, %c0_2] : memref<128x256xf32, #tpu.memory_space<vmem>>, vector<128x256xf32>
    %cst = arith.constant dense<0.000000e+00> : vector<13x256xf32>
    %2 = tpu.matmul %0, %1, %cst {dimension_numbers = #tpu.dot_dimension_numbers<[1], [0], [0], [1], [0, 0, 1, 1], [], []>} : vector<13x128xf32>, vector<128x256xf32>, vector<13x256xf32> -> vector<13x256xf32>
    %c0_3 = arith.constant 0 : index
    %c0_4 = arith.constant 0 : index
    %3 = vector.load %arg3[%c0_3, %c0_4] : memref<1x256xf32, #tpu.memory_space<vmem>>, vector<1x256xf32>
    %4 = vector.broadcast %3 : vector<1x256xf32> to vector<13x256xf32>
    %5 = arith.addf %2, %4 : vector<13x256xf32>
    %cst_5 = arith.constant 1.000000e-01 : f32
    %6 = vector.broadcast %cst_5 : f32 to vector<13x256xf32>
    %7 = arith.mulf %6, %5 : vector<13x256xf32>
    %8 = arith.maximumf %5, %7 : vector<13x256xf32>
    %c0_6 = arith.constant 0 : index
    %c0_7 = arith.constant 0 : index
    %9 = vector.load %arg4[%c0_6, %c0_7] : memref<13x256xf32, #tpu.memory_space<vmem>>, vector<13x256xf32>
    tpu.vector_store %arg4[%c0_6, %c0_7], %8 {strides = array<i32>} : memref<13x256xf32, #tpu.memory_space<vmem>>, vector<13x256xf32>,
    return
  }
  func.func @transform_0(%arg0: i32) -> (i32, i32) {
    %c0_i32 = arith.constant 0 : i32
    %c0_i32_0 = arith.constant 0 : i32
    return %arg0, %c0_i32 : i32, i32
  }
  func.func @transform_1(%arg0: i32) -> (i32, i32) {
    %c0_i32 = arith.constant 0 : i32
    %c0_i32_0 = arith.constant 0 : i32
    %c0_i32_1 = arith.constant 0 : i32
    return %c0_i32, %c0_i32_0 : i32, i32
  }
  func.func @transform_2(%arg0: i32) -> (i32, i32) {
    %c0_i32 = arith.constant 0 : i32
    %c0_i32_0 = arith.constant 0 : i32
    %c0_i32_1 = arith.constant 0 : i32
    return %c0_i32, %c0_i32_0 : i32, i32
  }
  func.func @transform_3(%arg0: i32) -> (i32, i32) {
    %c0_i32 = arith.constant 0 : i32
    %c0_i32_0 = arith.constant 0 : i32
    return %arg0, %c0_i32 : i32, i32
  }
}

</mosaic_0001>

<llo_original>
// kernel: brdf_embed_block.1
$region0: #{brdf_embed_block.1}
  #allocation0 [shape = 'u32[]', space=smem, size = 0x4, offset = 0x4, fixed_abs, tag = 'smem constant byte address 0x4 - core index']
  #allocation1 [shape = 'u32[144,128]{1,0:T(1,128)}', space=vmem, size = 0x12000, scoped, tag = 'internal scratch']
  %s0 = inlined_call_operand.vmem [shape: f32[13,128], index: 0, kind: input, shape index: {}]
  %s1 = inlined_call_operand.vmem [shape: f32[128,256], index: 1, kind: input, shape index: {}]
  %s2 = inlined_call_operand.vmem [shape: f32[1,256], index: 2, kind: input, shape index: {}]
  %s3 = inlined_call_operand.vmem [shape: f32[13,256], index: 3, kind: output, shape index: {}]
  %s4 = sld [smem:[#allocation0]]
  $region22: #{brdf_embed_block.1} parent=0
    _
  %s6 = ssub.s32 1, %s4
  %s7 = scalar_select 0, %s6, %s4
  // Predicated region
  $region2: #{brdf_embed_block.1} parent=0 // pred_check
    _
  $region3: #{brdf_embed_block.1} parent=0 // pred_check_branch
    %9 = sbr.rel (0) target = $region5
  $region4: #{brdf_embed_block.1} parent=0 // pred_region
    _
  $region5: #{brdf_embed_block.1} parent=0 // pred_fallthru
    _
  // Predicated region
  $region6: #{brdf_embed_block.1} parent=0 // pred_check
    _
  $region7: #{brdf_embed_block.1} parent=0 // pred_check_branch
    %11 = sbr.rel (0) target = $region9
  $region8: #{brdf_embed_block.1} parent=0 // pred_region
    _
  $region9: #{brdf_embed_block.1} parent=0 // pred_fallthru
    _
  // Predicated region
  $region10: #{brdf_embed_block.1} parent=0 // pred_check
    _
  $region11: #{brdf_embed_block.1} parent=0 // pred_check_branch
    %13 = sbr.rel (0) target = $region13
  $region12: #{brdf_embed_block.1} parent=0 // pred_region
    _
  $region13: #{brdf_embed_block.1} parent=0 // pred_fallthru
    _
  %v14 = vld [vmem:[%s0] sm:$0xff]
  %v15 = vld [vmem:[%s0 + $0x8] sm:$0x1f]
  %v16 = vld [vmem:[%s1] sm:$0xff]
  %v17 = vld [vmem:[%s1 + $0x8] sm:$0xff]
  %v18 = vld [vmem:[%s1 + $0x10] sm:$0xff]
  %v19 = vld [vmem:[%s1 + $0x18] sm:$0xff]
  %v20 = vld [vmem:[%s1 + $0x20] sm:$0xff]
  %v21 = vld [vmem:[%s1 + $0x28] sm:$0xff]
  %v22 = vld [vmem:[%s1 + $0x30] sm:$0xff]
  %v23 = vld [vmem:[%s1 + $0x38] sm:$0xff]
  %v24 = vld [vmem:[%s1 + $0x40] sm:$0xff]
  %v25 = vld [vmem:[%s1 + $0x48] sm:$0xff]
  %v26 = vld [vmem:[%s1 + $0x50] sm:$0xff]
  %v27 = vld [vmem:[%s1 + $0x58] sm:$0xff]
  %v28 = vld [vmem:[%s1 + $0x60] sm:$0xff]
  %v29 = vld [vmem:[%s1 + $0x68] sm:$0xff]
  %v30 = vld [vmem:[%s1 + $0x70] sm:$0xff]
  %v31 = vld [vmem:[%s1 + $0x78] sm:$0xff]
  %v32 = vld [vmem:[%s1 + $0x80] sm:$0xff]
  %v33 = vld [vmem:[%s1 + $0x88] sm:$0xff]
  %v34 = vld [vmem:[%s1 + $0x90] sm:$0xff]
  %v35 = vld [vmem:[%s1 + $0x98] sm:$0xff]
  %v36 = vld [vmem:[%s1 + $0xa0] sm:$0xff]
  %v37 = vld [vmem:[%s1 + $0xa8] sm:$0xff]
  %v38 = vld [vmem:[%s1 + $0xb0] sm:$0xff]
  %v39 = vld [vmem:[%s1 + $0xb8] sm:$0xff]
  %v40 = vld [vmem:[%s1 + $0xc0] sm:$0xff]
  %v41 = vld [vmem:[%s1 + $0xc8] sm:$0xff]
  %v42 = vld [vmem:[%s1 + $0xd0] sm:$0xff]
  %v43 = vld [vmem:[%s1 + $0xd8] sm:$0xff]
  %v44 = vld [vmem:[%s1 + $0xe0] sm:$0xff]
  %v45 = vld [vmem:[%s1 + $0xe8] sm:$0xff]
  %v46 = vld [vmem:[%s1 + $0xf0] sm:$0xff]
  %v47 = vld [vmem:[%s1 + $0xf8] sm:$0xff]
  %v48 = vld [vmem:[%s2] sm:$0x3]
  %v50 = vlaneseq
  %v51 = vshrl.u32 %v50, 7
  %v52 = vsub.s32 0, %v51
  %v53 = vrot.slane %v48, %v52
  %v54 = vlaneseq
  %v55 = vshrl.u32 %v54, 7
  %v56 = vsub.s32 1, %v55
  %v57 = vrot.slane %v48, %v56
  %60 = vmatprep.subr.mxu0 %v17
  %61 = vmatpush1.msra.mxu0 %v16
  %62 = vmatprep.subr.mxu0 %v19
  %63 = vmatpush1.msra.mxu0 %v18
  %64 = vmatprep.subr.mxu0 %v21
  %65 = vmatpush1.msra.mxu0 %v20
  %66 = vmatprep.subr.mxu0 %v23
  %67 = vmatpush1.msra.mxu0 %v22
  %68 = vmatprep.subr.mxu0 %v25
  %69 = vmatpush1.msra.mxu0 %v24
  %70 = vmatprep.subr.mxu0 %v27
  %71 = vmatpush1.msra.mxu0 %v26
  %72 = vmatprep.subr.mxu0 %v29
  %73 = vmatpush1.msra.mxu0 %v28
  %74 = vmatprep.subr.mxu0 %v31
  %75 = vmatpush1.msra.mxu0 %v30
  %76 = vmatprep.subr.mxu0 %v33
  %77 = vmatpush1.msra.mxu0 %v32
  %78 = vmatprep.subr.mxu0 %v35
  %79 = vmatpush1.msra.mxu0 %v34
  %80 = vmatprep.subr.mxu0 %v37
  %81 = vmatpush1.msra.mxu0 %v36
  %82 = vmatprep.subr.mxu0 %v39
  %83 = vmatpush1.msra.mxu0 %v38
  %84 = vmatprep.subr.mxu0 %v41
  %85 = vmatpush1.msra.mxu0 %v40
  %86 = vmatprep.subr.mxu0 %v43
  %87 = vmatpush1.msra.mxu0 %v42
  %88 = vmatprep.subr.mxu0 %v45
  %89 = vmatpush1.msra.mxu0 %v44
  %90 = vmatprep.subr.mxu0 %v47
  %91 = vmatpush1.msra.mxu0 %v46
  %92 = vmatprep.subr.mxu0 0.0
  %93 = vmatpush1.msra.mxu0 0.0
  %94 = vmatprep.subr.mxu0 0.0
  %95 = vmatpush1.msra.mxu0 0.0
  %96 = vmatprep.subr.mxu0 0.0
  %97 = vmatpush1.msra.mxu0 0.0
  %98 = vmatprep.subr.mxu0 0.0
  %99 = vmatpush1.msra.mxu0 0.0
  %100 = vmatprep.subr.mxu0 0.0
  %101 = vmatpush1.msra.mxu0 0.0
  %102 = vmatprep.subr.mxu0 0.0
  %103 = vmatpush1.msra.mxu0 0.0
  %104 = vmatprep.subr.mxu0 0.0
  %105 = vmatpush1.msra.mxu0 0.0
  %106 = vmatprep.subr.mxu0 0.0
  %107 = vmatpush1.msra.mxu0 0.0
  %108 = vmatprep.subr.mxu0 0.0
  %109 = vmatpush1.msra.mxu0 0.0
  %110 = vmatprep.subr.mxu0 0.0
  %111 = vmatpush1.msra.mxu0 0.0
  %112 = vmatprep.subr.mxu0 0.0
  %113 = vmatpush1.msra.mxu0 0.0
  %114 = vmatprep.subr.mxu0 0.0
  %115 = vmatpush1.msra.mxu0 0.0
  %116 = vmatprep.subr.mxu0 0.0
  %117 = vmatpush1.msra.mxu0 0.0
  %118 = vmatprep.subr.mxu0 0.0
  %119 = vmatpush1.msra.mxu0 0.0
  %120 = vmatprep.subr.mxu0 0.0
  %121 = vmatpush1.msra.mxu0 0.0
  %122 = vmatprep.subr.mxu0 0.0
  %123 = vmatpush1.msra.mxu0 0.0
  %124 = vmatprep.mubr.f32.mxu0 0.0
  %125 = vmatmul.mubr.f32.gmra.mrb[0].mxu0 %v14
  %v126 = vpop.f32.mrb[0].mxu0
  %v127 = vadd.f32 %v53, %v126
  %v128 = vpop.f32.mrb[0].mxu0
  %v129 = vadd.f32 %v57, %v128
  %130 = vmatprep.mubr.f32.mxu0 0.0
  %131 = vmatmul.mubr.f32.gmra.mrb[0].mxu0 %v15
  %v132 = vpop.f32.mrb[0].mxu0
  %v133 = vadd.f32 %v53, %v132
  %v134 = vpop.f32.mrb[0].mxu0
  %v135 = vadd.f32 %v57, %v134
  %136 = vdwg.mxu0
  %v137 = vmul.f32 %v127, 0.1
  %v138 = vmul.f32 %v129, 0.1
  %v139 = vmul.f32 %v133, 0.1
  %v140 = vmul.f32 %v135, 0.1
  %v141 = vmax.f32 %v127, %v137
  %v142 = vmax.f32 %v129, %v138
  %v143 = vmax.f32 %v133, %v139
  %v144 = vmax.f32 %v135, %v140
  %145 = vst [vmem:[%s3] sm:$0xff] %v141
  %146 = vst [vmem:[%s3 + $0x8] sm:$0xff] %v142
  %147 = vst [vmem:[%s3 + $0x10] sm:$0x1f] %v143
  %148 = vst [vmem:[%s3 + $0x18] sm:$0x1f] %v144
  // Predicated region
  $region14: #{brdf_embed_block.1} parent=0 // pred_check
    _
  $region15: #{brdf_embed_block.1} parent=0 // pred_check_branch
    %150 = sbr.rel (0) target = $region17
  $region16: #{brdf_embed_block.1} parent=0 // pred_region
    _
  $region17: #{brdf_embed_block.1} parent=0 // pred_fallthru
    _
  // Predicated region
  $region18: #{brdf_embed_block.1} parent=0 // pred_check
    _
  $region19: #{brdf_embed_block.1} parent=0 // pred_check_branch
    %152 = sbr.rel (0) target = $region21
  $region20: #{brdf_embed_block.1} parent=0 // pred_region
    _
  $region21: #{brdf_embed_block.1} parent=0 // pred_fallthru
    _

</llo_original>
